<compile_context>
chip_gen: v7x
topology: tpu7x:2x2x1
jax: 0.10.0
libtpu: 0.0.40
codegen_flags: <defaults>
</compile_context>

<pallas_src>
import math

import jax
import jax.numpy as jnp
from jax.experimental import pallas as pl
from jax.experimental.pallas import tpu as pltpu

_LANE = 128
_SUBLANE = 8


def _round_up(x, m):
    return (x + m - 1) // m * m


def _make_kernel(n_mods, embed_dim, out_pad):
    """Kernel over one B tile.

    refs = (x_0..x_{n-1}, w_0..w_{n-1}, b_0..b_{n-1}, out)
    out block is [tb, out_pad]; modality m owns lanes [m*E, (m+1)*E).
    """

    def kernel(*refs):
        x_refs = refs[0:n_mods]
        w_refs = refs[n_mods:2 * n_mods]
        b_refs = refs[2 * n_mods:3 * n_mods]
        o_ref = refs[3 * n_mods]
        # n_mods is small and static -> unrolled; the LLO scheduler overlaps
        # the per-modality matmuls within one grid step.
        for m in range(n_mods):
            acc = jnp.dot(x_refs[m][...], w_refs[m][...],
                          preferred_element_type=jnp.float32)
            acc = acc + b_refs[m][...].astype(jnp.float32)
            # Static lane slab at offset m*E inside the fused 128-aligned
            # output block (masked vst iff E is not 128-aligned).
            o_ref[:, m * embed_dim:(m + 1) * embed_dim] = acc.astype(o_ref.dtype)
        used = n_mods * embed_dim
        if out_pad > used:  # static condition: zero the padding lanes once
            o_ref[:, used:] = jnp.zeros(
                (o_ref.shape[0], out_pad - used), o_ref.dtype)

    return kernel


def _tpu_defaults():
    """Generation-aware (pipeline VMEM budget bytes, min number of B tiles)."""
    kind = ""
    try:
        kind = jax.devices()[0].device_kind.lower()
    except Exception:
        pass
    if "v5 lite" in kind or "v5lite" in kind or "v5e" in kind:
        return 14 << 20, 1    # v5e: 128 MiB phys / 16 MiB scoped default, 1 TC
    if "v6" in kind:
        return 26 << 20, 1    # v6e: 128 MiB phys / 32 MiB scoped default, 1 TC
    if "v7" in kind or "tpu7" in kind:
        return 22 << 20, 2    # v7x: 64 MiB phys per TC, 2 TCs -> want grid_b >= 2
    return 20 << 20, 2        # unknown: conservative budget, assume 2 TCs


def _choose_b_tile(B, sizes, embed_dim, out_pad, x_isz, w_isz, out_isz,
                   budget_bytes, min_tiles):
    """Largest B tile (multiple of 8) whose double-buffered pipeline blocks fit
    the VMEM budget; optionally capped so there are >= min_tiles grid steps."""
    n_mods = len(sizes)
    # Weights + biases resident every step (double-buffered by the pipeline).
    resident = 2 * (sum(s * embed_dim for s in sizes) * w_isz
                    + n_mods * embed_dim * w_isz)
    # Streamed per B row: all modality x rows + the fused output row (2x each).
    per_row = 2 * (sum(sizes) * x_isz + out_pad * out_isz)
    avail = max(budget_bytes - resident, 0)
    max_rows = max((avail // max(per_row, 1)) // _SUBLANE * _SUBLANE, _SUBLANE)
    tb = min(B, max_rows)
    if min_tiles > 1 and B >= min_tiles * _SUBLANE:
        # Let both TensorCores get work on 2-TC chips.
        tb = min(tb, _round_up(pl.cdiv(B, min_tiles), _SUBLANE))
    if tb < B:
        tb = max((tb // _SUBLANE) * _SUBLANE, _SUBLANE)
    return tb


def mod_embed(x_mod, weights, biases, *, embed_dim, out_dtype=None,
              vmem_budget_bytes=None, min_b_tiles=None):
    """Multi-modality embedding.

    x_mod:   list of [B, sizes[i]] arrays (no padding; dtype f32 or bf16)
    weights: list of [sizes[i], embed_dim] arrays (= W_i^T of nn.Linear)
    biases:  list of [1, embed_dim] arrays
    Returns  [B, n_mods, embed_dim]  (== torch.stack(...).permute(1, 0, 2)).

    Modality subset selection (the `i` argument of the PyTorch forward) is a
    static Python-level choice: pass the selected sublists.
    For best HBM traffic pass x/weights/biases already in bf16; accumulation
    stays f32 inside the kernel.
    """
    n_mods = len(x_mod)
    B = x_mod[0].shape[0]
    sizes = [int(x.shape[-1]) for x in x_mod]
    for m in range(n_mods):
        assert weights[m].shape == (sizes[m], embed_dim), (
            "weights[%d] must be W^T of nn.Linear: shape [in, embed_dim], got %s"
            % (m, weights[m].shape))
        assert biases[m].shape == (1, embed_dim), biases[m].shape

    if out_dtype is None:
        out_dtype = x_mod[0].dtype

    # Fused, lane-dense output width (single 128-aligned slab for ALL mods).
    used = n_mods * embed_dim
    out_pad = _round_up(used, _LANE)

    defaults = _tpu_defaults()
    budget = vmem_budget_bytes if vmem_budget_bytes is not None else defaults[0]
    min_tiles = min_b_tiles if min_b_tiles is not None else defaults[1]

    x_isz = jnp.dtype(x_mod[0].dtype).itemsize
    w_isz = jnp.dtype(weights[0].dtype).itemsize
    out_isz = jnp.dtype(out_dtype).itemsize

    tb = _choose_b_tile(B, sizes, embed_dim, out_pad, x_isz, w_isz, out_isz,
                        budget, min_tiles)
    grid_b = pl.cdiv(B, tb)   # ragged last tile handled by Pallas

    in_specs = (
        # Per-modality activations: streamed per B tile.
        [pl.BlockSpec((tb, sizes[m]), lambda b: (b, 0)) for m in range(n_mods)]
        # Per-modality W^T: constant block index -> DMA not re-issued per tile.
        + [pl.BlockSpec((sizes[m], embed_dim), lambda b: (0, 0))
           for m in range(n_mods)]
        # Per-modality bias.
        + [pl.BlockSpec((1, embed_dim), lambda b: (0, 0)) for m in range(n_mods)]
    )
    out_spec = pl.BlockSpec((tb, out_pad), lambda b: (b, 0))

    flops = 2 * B * sum(s * embed_dim for s in sizes)
    bytes_accessed = (sum(B * s for s in sizes) * x_isz                 # x
                      + sum(s * embed_dim for s in sizes) * w_isz       # W
                      + n_mods * embed_dim * w_isz                      # b
                      + B * out_pad * out_isz)                          # out
    cost = pl.CostEstimate(flops=flops, transcendentals=0,
                           bytes_accessed=bytes_accessed)

    y = pl.pallas_call(
        _make_kernel(n_mods, embed_dim, out_pad),
        out_shape=jax.ShapeDtypeStruct((B, out_pad), out_dtype),
        grid_spec=pltpu.PrefetchScalarGridSpec(
            num_scalar_prefetch=0,
            grid=(grid_b,),
            in_specs=in_specs,
            out_specs=out_spec,
        ),
        compiler_params=pltpu.CompilerParams(
            dimension_semantics=("parallel",),       # B tiles -> megacore shard
            vmem_limit_bytes=budget + (4 << 20),     # match the tiling budget
        ),
        cost_estimate=cost,
    )(*x_mod, *weights, *biases)

    if out_pad != used:
        # Small XLA copy (B*out_pad -> B*used) only when n_mods*embed_dim is
        # not 128-aligned; 128-aligned production shapes skip it entirely.
        y = y[:, :used]
    return y.reshape(B, n_mods, embed_dim)


def init_params(key, sizes, embed_dim, dtype=jnp.float32):
    """nn.Linear-style init: W_i, b_i ~ U(-1/sqrt(in), 1/sqrt(in)).
    Returned in kernel layout: W_i^T [size_i, embed_dim], b_i [1, embed_dim]."""
    n_mods = len(sizes)
    keys = jax.random.split(key, 2 * n_mods)
    weights, biases = [], []
    for i, size in enumerate(sizes):
        bound = 1.0 / math.sqrt(size)
        w = jax.random.uniform(keys[2 * i], (size, embed_dim),
                               minval=-bound, maxval=bound, dtype=jnp.float32)
        bvec = jax.random.uniform(keys[2 * i + 1], (1, embed_dim),
                                  minval=-bound, maxval=bound, dtype=jnp.float32)
        weights.append(w.astype(dtype))
        biases.append(bvec.astype(dtype))
    return weights, biases


if __name__ == "__main__":
    # Small shapes consistent with the module's forward.
    sizes = [16, 24, 32]          # per-modality input dims
    embed_dim = 32
    B = 8
    n_mods = len(sizes)

    key = jax.random.PRNGKey(0)
    k_param, *k_inputs = jax.random.split(key, 1 + n_mods)

    # Parameters (deterministic, in-script) in kernel layout (W^T, bias row).
    weights, biases = init_params(k_param, sizes, embed_dim, dtype=jnp.float32)

    # Example inputs: list of per-modality tensors [B, size_i] (no padding).
    x_mod = [
        jax.random.normal(k_inputs[i], (B, sizes[i]), dtype=jnp.float32)
        for i in range(n_mods)
    ]

    # Pure-JAX reference (same semantics as the PyTorch forward), f32.
    ref = jnp.stack(
        [x_mod[i] @ weights[i] + biases[i][0] for i in range(n_mods)]
    ).transpose(1, 0, 2)

    # 1) f32 path: matches the reference tightly.
    out_f32 = mod_embed(x_mod, weights, biases, embed_dim=embed_dim,
                        out_dtype=jnp.float32)
    out_f32 = jax.block_until_ready(out_f32)
    assert out_f32.shape == (B, n_mods, embed_dim), out_f32.shape
    assert jnp.allclose(out_f32, ref, atol=1e-5, rtol=1e-5)

    # 2) bf16 in/out path (preferred for perf: halves x/W reads and the
    #    dominant output write stream; accumulation stays f32 in-kernel).
    x_bf = [x.astype(jnp.bfloat16) for x in x_mod]
    w_bf = [w.astype(jnp.bfloat16) for w in weights]
    b_bf = [b.astype(jnp.bfloat16) for b in biases]
    out_bf = mod_embed(x_bf, w_bf, b_bf, embed_dim=embed_dim,
                       out_dtype=jnp.bfloat16)
    out_bf = jax.block_until_ready(out_bf)
    assert out_bf.shape == (B, n_mods, embed_dim), out_bf.shape
    assert jnp.allclose(out_bf.astype(jnp.float32), ref, atol=5e-2, rtol=5e-2)

    # TODO(synk): norm_layer defaults to nn.Identity (no-op); a non-None
    # norm_layer (e.g. LayerNorm) would need an extra in-kernel reduction.
    print("KERNEL_OK")
</pallas_src>

<mosaic_0001>
module attributes {stable_mosaic.version = 11 : i64} {
  func.func @kernel(%arg0: i32, %arg1: memref<8x16xf32, #tpu.memory_space<vmem>>, %arg2: memref<8x24xf32, #tpu.memory_space<vmem>>, %arg3: memref<8x32xf32, #tpu.memory_space<vmem>>, %arg4: memref<16x32xf32, #tpu.memory_space<vmem>>, %arg5: memref<24x32xf32, #tpu.memory_space<vmem>>, %arg6: memref<32x32xf32, #tpu.memory_space<vmem>>, %arg7: memref<1x32xf32, #tpu.memory_space<vmem>>, %arg8: memref<1x32xf32, #tpu.memory_space<vmem>>, %arg9: memref<1x32xf32, #tpu.memory_space<vmem>>, %arg10: memref<8x128xf32, #tpu.memory_space<vmem>>) attributes {dimension_semantics = [#tpu.dimension_semantics<parallel>], iteration_bounds = array<i64: 1>, scalar_prefetch = 0 : i64, scratch_operands = 0 : i64, tpu.core_type = #tpu.core_type<tc>, window_params = [{transform_indices = @transform_0, window_bounds = array<i64: 8, 16>}, {transform_indices = @transform_1, window_bounds = array<i64: 8, 24>}, {transform_indices = @transform_2, window_bounds = array<i64: 8, 32>}, {pipeline_mode = #tpu.pipeline_mode<synchronous>, transform_indices = @transform_3, window_bounds = array<i64: 16, 32>}, {pipeline_mode = #tpu.pipeline_mode<synchronous>, transform_indices = @transform_4, window_bounds = array<i64: 24, 32>}, {pipeline_mode = #tpu.pipeline_mode<synchronous>, transform_indices = @transform_5, window_bounds = array<i64: 32, 32>}, {pipeline_mode = #tpu.pipeline_mode<synchronous>, transform_indices = @transform_6, window_bounds = array<i64: 1, 32>}, {pipeline_mode = #tpu.pipeline_mode<synchronous>, transform_indices = @transform_7, window_bounds = array<i64: 1, 32>}, {pipeline_mode = #tpu.pipeline_mode<synchronous>, transform_indices = @transform_8, window_bounds = array<i64: 1, 32>}, {transform_indices = @transform_9, window_bounds = array<i64: 8, 128>}]} {
    %c0 = arith.constant 0 : index
    %c0_0 = arith.constant 0 : index
    %0 = vector.load %arg1[%c0, %c0_0] : memref<8x16xf32, #tpu.memory_space<vmem>>, vector<8x16xf32>
    %c0_1 = arith.constant 0 : index
    %c0_2 = arith.constant 0 : index
    %1 = vector.load %arg4[%c0_1, %c0_2] : memref<16x32xf32, #tpu.memory_space<vmem>>, vector<16x32xf32>
    %cst = arith.constant dense<0.000000e+00> : vector<8x32xf32>
    %2 = tpu.matmul %0, %1, %cst {dimension_numbers = #tpu.dot_dimension_numbers<[1], [0], [0], [1], [0, 0, 1, 1], [], []>} : vector<8x16xf32>, vector<16x32xf32>, vector<8x32xf32> -> vector<8x32xf32>
    %c0_3 = arith.constant 0 : index
    %c0_4 = arith.constant 0 : index
    %3 = vector.load %arg7[%c0_3, %c0_4] : memref<1x32xf32, #tpu.memory_space<vmem>>, vector<1x32xf32>
    %4 = vector.broadcast %3 : vector<1x32xf32> to vector<8x32xf32>
    %5 = arith.addf %2, %4 : vector<8x32xf32>
    %c0_5 = arith.constant 0 : index
    %c0_6 = arith.constant 0 : index
    %6 = vector.load %arg10[%c0_5, %c0_6] : memref<8x128xf32, #tpu.memory_space<vmem>>, vector<8x32xf32>
    tpu.vector_store %arg10[%c0_5, %c0_6], %5 {strides = array<i32>} : memref<8x128xf32, #tpu.memory_space<vmem>>, vector<8x32xf32>,
    %c0_7 = arith.constant 0 : index
    %c0_8 = arith.constant 0 : index
    %7 = vector.load %arg2[%c0_7, %c0_8] : memref<8x24xf32, #tpu.memory_space<vmem>>, vector<8x24xf32>
    %c0_9 = arith.constant 0 : index
    %c0_10 = arith.constant 0 : index
    %8 = vector.load %arg5[%c0_9, %c0_10] : memref<24x32xf32, #tpu.memory_space<vmem>>, vector<24x32xf32>
    %cst_11 = arith.constant dense<0.000000e+00> : vector<8x32xf32>
    %9 = tpu.matmul %7, %8, %cst_11 {dimension_numbers = #tpu.dot_dimension_numbers<[1], [0], [0], [1], [0, 0, 1, 1], [], []>} : vector<8x24xf32>, vector<24x32xf32>, vector<8x32xf32> -> vector<8x32xf32>
    %c0_12 = arith.constant 0 : index
    %c0_13 = arith.constant 0 : index
    %10 = vector.load %arg8[%c0_12, %c0_13] : memref<1x32xf32, #tpu.memory_space<vmem>>, vector<1x32xf32>
    %11 = vector.broadcast %10 : vector<1x32xf32> to vector<8x32xf32>
    %12 = arith.addf %9, %11 : vector<8x32xf32>
    %c0_14 = arith.constant 0 : index
    %c32 = arith.constant 32 : index
    %13 = vector.load %arg10[%c0_14, %c32] : memref<8x128xf32, #tpu.memory_space<vmem>>, vector<8x32xf32>
    tpu.vector_store %arg10[%c0_14, %c32], %12 {strides = array<i32>} : memref<8x128xf32, #tpu.memory_space<vmem>>, vector<8x32xf32>,
    %c0_15 = arith.constant 0 : index
    %c0_16 = arith.constant 0 : index
    %14 = vector.load %arg3[%c0_15, %c0_16] : memref<8x32xf32, #tpu.memory_space<vmem>>, vector<8x32xf32>
    %c0_17 = arith.constant 0 : index
    %c0_18 = arith.constant 0 : index
    %15 = vector.load %arg6[%c0_17, %c0_18] : memref<32x32xf32, #tpu.memory_space<vmem>>, vector<32x32xf32>
    %cst_19 = arith.constant dense<0.000000e+00> : vector<8x32xf32>
    %16 = tpu.matmul %14, %15, %cst_19 {dimension_numbers = #tpu.dot_dimension_numbers<[1], [0], [0], [1], [0, 0, 1, 1], [], []>} : vector<8x32xf32>, vector<32x32xf32>, vector<8x32xf32> -> vector<8x32xf32>
    %c0_20 = arith.constant 0 : index
    %c0_21 = arith.constant 0 : index
    %17 = vector.load %arg9[%c0_20, %c0_21] : memref<1x32xf32, #tpu.memory_space<vmem>>, vector<1x32xf32>
    %18 = vector.broadcast %17 : vector<1x32xf32> to vector<8x32xf32>
    %19 = arith.addf %16, %18 : vector<8x32xf32>
    %c0_22 = arith.constant 0 : index
    %c64 = arith.constant 64 : index
    %20 = vector.load %arg10[%c0_22, %c64] : memref<8x128xf32, #tpu.memory_space<vmem>>, vector<8x32xf32>
    tpu.vector_store %arg10[%c0_22, %c64], %19 {strides = array<i32>} : memref<8x128xf32, #tpu.memory_space<vmem>>, vector<8x32xf32>,
    %cst_23 = arith.constant 0.000000e+00 : f32
    %21 = vector.broadcast %cst_23 : f32 to vector<8x32xf32>
    %c0_24 = arith.constant 0 : index
    %c96 = arith.constant 96 : index
    %22 = vector.load %arg10[%c0_24, %c96] : memref<8x128xf32, #tpu.memory_space<vmem>>, vector<8x32xf32>
    tpu.vector_store %arg10[%c0_24, %c96], %21 {strides = array<i32>} : memref<8x128xf32, #tpu.memory_space<vmem>>, vector<8x32xf32>,
    return
  }
  func.func @transform_0(%arg0: i32) -> (i32, i32) {
    %c0_i32 = arith.constant 0 : i32
    %c0_i32_0 = arith.constant 0 : i32
    return %arg0, %c0_i32 : i32, i32
  }
  func.func @transform_1(%arg0: i32) -> (i32, i32) {
    %c0_i32 = arith.constant 0 : i32
    %c0_i32_0 = arith.constant 0 : i32
    return %arg0, %c0_i32 : i32, i32
  }
  func.func @transform_2(%arg0: i32) -> (i32, i32) {
    %c0_i32 = arith.constant 0 : i32
    %c0_i32_0 = arith.constant 0 : i32
    return %arg0, %c0_i32 : i32, i32
  }
  func.func @transform_3(%arg0: i32) -> (i32, i32) {
    %c0_i32 = arith.constant 0 : i32
    %c0_i32_0 = arith.constant 0 : i32
    %c0_i32_1 = arith.constant 0 : i32
    return %c0_i32, %c0_i32_0 : i32, i32
  }
  func.func @transform_4(%arg0: i32) -> (i32, i32) {
    %c0_i32 = arith.constant 0 : i32
    %c0_i32_0 = arith.constant 0 : i32
    %c0_i32_1 = arith.constant 0 : i32
    return %c0_i32, %c0_i32_0 : i32, i32
  }
  func.func @transform_5(%arg0: i32) -> (i32, i32) {
    %c0_i32 = arith.constant 0 : i32
    %c0_i32_0 = arith.constant 0 : i32
    %c0_i32_1 = arith.constant 0 : i32
    return %c0_i32, %c0_i32_0 : i32, i32
  }
  func.func @transform_6(%arg0: i32) -> (i32, i32) {
    %c0_i32 = arith.constant 0 : i32
    %c0_i32_0 = arith.constant 0 : i32
    %c0_i32_1 = arith.constant 0 : i32
    return %c0_i32, %c0_i32_0 : i32, i32
  }
  func.func @transform_7(%arg0: i32) -> (i32, i32) {
    %c0_i32 = arith.constant 0 : i32
    %c0_i32_0 = arith.constant 0 : i32
    %c0_i32_1 = arith.constant 0 : i32
    return %c0_i32, %c0_i32_0 : i32, i32
  }
  func.func @transform_8(%arg0: i32) -> (i32, i32) {
    %c0_i32 = arith.constant 0 : i32
    %c0_i32_0 = arith.constant 0 : i32
    %c0_i32_1 = arith.constant 0 : i32
    return %c0_i32, %c0_i32_0 : i32, i32
  }
  func.func @transform_9(%arg0: i32) -> (i32, i32) {
    %c0_i32 = arith.constant 0 : i32
    %c0_i32_0 = arith.constant 0 : i32
    return %arg0, %c0_i32 : i32, i32
  }
}

</mosaic_0001>

<llo_original>
// kernel: tpu_custom_call.1
$region0: #{tpu_custom_call.1}
  #allocation0 [shape = 'u32[]', space=smem, size = 0x4, offset = 0x4, fixed_abs, tag = 'smem constant byte address 0x4 - core index']
  #allocation1 [shape = 'u32[144,128]{1,0:T(1,128)}', space=vmem, size = 0x12000, scoped, tag = 'internal scratch']
  %s0 = inlined_call_operand.hbm [shape: f32[8,16], index: 0, kind: input, shape index: {}]
  %s1 = inlined_call_operand.hbm [shape: f32[8,24], index: 1, kind: input, shape index: {}]
  %s2 = inlined_call_operand.hbm [shape: f32[8,32], index: 2, kind: input, shape index: {}]
  %s3 = inlined_call_operand.hbm [shape: f32[16,32], index: 3, kind: input, shape index: {}]
  %s4 = inlined_call_operand.hbm [shape: f32[24,32], index: 4, kind: input, shape index: {}]
  %s5 = inlined_call_operand.hbm [shape: f32[32,32], index: 5, kind: input, shape index: {}]
  %s6 = inlined_call_operand.vmem [shape: f32[1,32], index: 6, kind: input, shape index: {}]
  %s7 = inlined_call_operand.vmem [shape: f32[1,32], index: 7, kind: input, shape index: {}]
  %s8 = inlined_call_operand.vmem [shape: f32[1,32], index: 8, kind: input, shape index: {}]
  %s9 = inlined_call_operand.hbm [shape: f32[8,128], index: 9, kind: output, shape index: {}]
  %s10 = sld [smem:[#allocation0]]
  $region70: #{tpu_custom_call.1} parent=0
    _
  %s12 = ssub.s32 1, %s10
  %s13 = scalar_select 0, %s12, %s10
  $region1: #{tpu_custom_call.1} parent=0
    #allocation2 [shape = 'u8[4096]{0}', space=vmem, size = 0x1000, scoped, tag = 'input window, operand 0, single buffered']
    #allocation3 [shape = 's32[1]{0}', space=sflag, size = 0x4, scoped, tag = 'scoped memory for tpu_custom_call.1']
    #allocation4 [shape = 's32[1]{0}', space=sflag, size = 0x4, scoped, tag = 'scoped memory for tpu_custom_call.1']
    #allocation5 [shape = 'u8[4096]{0}', space=vmem, size = 0x1000, scoped, tag = 'input window, operand 1, single buffered']
    #allocation6 [shape = 's32[1]{0}', space=sflag, size = 0x4, scoped, tag = 'scoped memory for tpu_custom_call.1']
    #allocation7 [shape = 'u8[4096]{0}', space=vmem, size = 0x1000, scoped, tag = 'input window, operand 2, single buffered']
    #allocation8 [shape = 'u8[8192]{0}', space=vmem, size = 0x2000, scoped, tag = 'input window, operand 3, single buffered']
    #allocation9 [shape = 's32[1]{0}', space=sflag, size = 0x4, scoped, tag = 'scoped memory for tpu_custom_call.1']
    #allocation10 [shape = 'u8[12288]{0}', space=vmem, size = 0x3000, scoped, tag = 'input window, operand 4, single buffered']
    #allocation11 [shape = 'u8[16384]{0}', space=vmem, size = 0x4000, scoped, tag = 'input window, operand 5, single buffered']
    #allocation12 [shape = 's32[1]{0}', space=sflag, size = 0x4, scoped, tag = 'scoped memory for tpu_custom_call.1']
    #allocation13 [shape = 'u8[4096]{0}', space=vmem, size = 0x1000, scoped, tag = 'output window, operand 0, single buffered']
    %14 = vsyncpa [#allocation3], 0
    %15 = vsyncpa [#allocation6], 0
    %16 = vsyncpa [#allocation9], 0
    %17 = vsyncpa [#allocation12], 0
    %18 = vsyncpa [#allocation4], 0
    // Predicated region
    $region2: #{tpu_custom_call.1} parent=1 // pred_check
      _
    $region3: #{tpu_custom_call.1} parent=1 // pred_check_branch
      %20 = sbr.rel (0) target = $region5
    $region4: #{tpu_custom_call.1} parent=1 // pred_region
      %s22 = ssub.s32 128, 128
      %23 = vsyncadd [#allocation3], %s22
      %s25 = sshll.u32 [#allocation2], 4
      %s26 = int_to_ptr.vmem [resolvable:$true] %s25
      %28 = dma.hbm_to_vmem [thread:$0]  %s0, 128, %s26, [#allocation3]
    $region5: #{tpu_custom_call.1} parent=1 // pred_fallthru
      _
    // Predicated region
    $region6: #{tpu_custom_call.1} parent=1 // pred_check
      _
    $region7: #{tpu_custom_call.1} parent=1 // pred_check_branch
      %30 = sbr.rel (0) target = $region9
    $region8: #{tpu_custom_call.1} parent=1 // pred_region
      %s32 = ssub.s32 128, 128
      %33 = vsyncadd [#allocation6], %s32
      %s35 = sshll.u32 [#allocation5], 4
      %s36 = int_to_ptr.vmem [resolvable:$true] %s35
      %38 = dma.hbm_to_vmem [thread:$0]  %s1, 128, %s36, [#allocation6]
    $region9: #{tpu_custom_call.1} parent=1 // pred_fallthru
      _
    // Predicated region
    $region10: #{tpu_custom_call.1} parent=1 // pred_check
      _
    $region11: #{tpu_custom_call.1} parent=1 // pred_check_branch
      %40 = sbr.rel (0) target = $region13
    $region12: #{tpu_custom_call.1} parent=1 // pred_region
      %s42 = ssub.s32 128, 128
      %43 = vsyncadd [#allocation6], %s42
      %s45 = sshll.u32 [#allocation7], 4
      %s46 = int_to_ptr.vmem [resolvable:$true] %s45
      %48 = dma.hbm_to_vmem [thread:$0]  %s2, 128, %s46, [#allocation6]
    $region13: #{tpu_custom_call.1} parent=1 // pred_fallthru
      _
    // Predicated region
    $region14: #{tpu_custom_call.1} parent=1 // pred_check
      _
    $region15: #{tpu_custom_call.1} parent=1 // pred_check_branch
      %50 = sbr.rel (0) target = $region17
    $region16: #{tpu_custom_call.1} parent=1 // pred_region
      %s52 = ssub.s32 256, 256
      %53 = vsyncadd [#allocation9], %s52
      %s54 = sshll.u32 [#allocation8], 4
      %s55 = int_to_ptr.vmem [resolvable:$true] %s54
      %60 = dma.hbm_to_vmem [thread:$0]  %s3, 256, %s55, [#allocation9], 128, 128, 8
    $region17: #{tpu_custom_call.1} parent=1 // pred_fallthru
      _
    // Predicated region
    $region18: #{tpu_custom_call.1} parent=1 // pred_check
      _
    $region19: #{tpu_custom_call.1} parent=1 // pred_check_branch
      %62 = sbr.rel (0) target = $region21
    $region20: #{tpu_custom_call.1} parent=1 // pred_region
      %s64 = ssub.s32 384, 384
      %65 = vsyncadd [#allocation9], %s64
      %s66 = sshll.u32 [#allocation10], 4
      %s67 = int_to_ptr.vmem [resolvable:$true] %s66
      %72 = dma.hbm_to_vmem [thread:$0]  %s4, 384, %s67, [#allocation9], 128, 128, 8
    $region21: #{tpu_custom_call.1} parent=1 // pred_fallthru
      _
    // Predicated region
    $region22: #{tpu_custom_call.1} parent=1 // pred_check
      _
    $region23: #{tpu_custom_call.1} parent=1 // pred_check_branch
      %74 = sbr.rel (0) target = $region25
    $region24: #{tpu_custom_call.1} parent=1 // pred_region
      %s76 = ssub.s32 512, 512
      %77 = vsyncadd [#allocation12], %s76
      %s78 = sshll.u32 [#allocation11], 4
      %s79 = int_to_ptr.vmem [resolvable:$true] %s78
      %84 = dma.hbm_to_vmem [thread:$0]  %s5, 512, %s79, [#allocation12], 128, 128, 8
    $region25: #{tpu_custom_call.1} parent=1 // pred_fallthru
      _
    // Predicated region
    $region26: #{tpu_custom_call.1} parent=1 // pred_check
      _
    $region27: #{tpu_custom_call.1} parent=1 // pred_check_branch
      %86 = sbr.rel (0) target = $region29
    $region28: #{tpu_custom_call.1} parent=1 // pred_region
      _
    $region29: #{tpu_custom_call.1} parent=1 // pred_fallthru
      _
    // Predicated region
    $region30: #{tpu_custom_call.1} parent=1 // pred_check
      _
    $region31: #{tpu_custom_call.1} parent=1 // pred_check_branch
      %88 = sbr.rel (0) target = $region33
    $region32: #{tpu_custom_call.1} parent=1 // pred_region
      _
    $region33: #{tpu_custom_call.1} parent=1 // pred_fallthru
      _
    // Predicated region
    $region34: #{tpu_custom_call.1} parent=1 // pred_check
      _
    $region35: #{tpu_custom_call.1} parent=1 // pred_check_branch
      %90 = sbr.rel (0) target = $region37
    $region36: #{tpu_custom_call.1} parent=1 // pred_region
      _
    $region37: #{tpu_custom_call.1} parent=1 // pred_fallthru
      _
    // Predicated region
    $region38: #{tpu_custom_call.1} parent=1 // pred_check
      _
    $region39: #{tpu_custom_call.1} parent=1 // pred_check_branch
      %92 = sbr.rel (0) target = $region41
    $region40: #{tpu_custom_call.1} parent=1 // pred_region
      %93 = dma.done [#allocation3], 128
    $region41: #{tpu_custom_call.1} parent=1 // pred_fallthru
      _
    // Predicated region
    $region42: #{tpu_custom_call.1} parent=1 // pred_check
      _
    $region43: #{tpu_custom_call.1} parent=1 // pred_check_branch
      %95 = sbr.rel (0) target = $region45
    $region44: #{tpu_custom_call.1} parent=1 // pred_region
      %96 = dma.done [#allocation6], 128
    $region45: #{tpu_custom_call.1} parent=1 // pred_fallthru
      _
    // Predicated region
    $region46: #{tpu_custom_call.1} parent=1 // pred_check
      _
    $region47: #{tpu_custom_call.1} parent=1 // pred_check_branch
      %98 = sbr.rel (0) target = $region49
    $region48: #{tpu_custom_call.1} parent=1 // pred_region
      %99 = dma.done [#allocation6], 128
    $region49: #{tpu_custom_call.1} parent=1 // pred_fallthru
      _
    // Predicated region
    $region50: #{tpu_custom_call.1} parent=1 // pred_check
      _
    $region51: #{tpu_custom_call.1} parent=1 // pred_check_branch
      %101 = sbr.rel (0) target = $region53
    $region52: #{tpu_custom_call.1} parent=1 // pred_region
      %102 = dma.done [#allocation9], 256
    $region53: #{tpu_custom_call.1} parent=1 // pred_fallthru
      _
    // Predicated region
    $region54: #{tpu_custom_call.1} parent=1 // pred_check
      _
    $region55: #{tpu_custom_call.1} parent=1 // pred_check_branch
      %104 = sbr.rel (0) target = $region57
    $region56: #{tpu_custom_call.1} parent=1 // pred_region
      %105 = dma.done [#allocation9], 384
    $region57: #{tpu_custom_call.1} parent=1 // pred_fallthru
      _
    // Predicated region
    $region58: #{tpu_custom_call.1} parent=1 // pred_check
      _
    $region59: #{tpu_custom_call.1} parent=1 // pred_check_branch
      %107 = sbr.rel (0) target = $region61
    $region60: #{tpu_custom_call.1} parent=1 // pred_region
      %108 = dma.done [#allocation12], 512
    $region61: #{tpu_custom_call.1} parent=1 // pred_fallthru
      _
    %v109 = vld [vmem:[#allocation2] sm:$0xff]
    %v110 = vld [vmem:[#allocation8] sm:$0xff]
    %v111 = vld [vmem:[#allocation8 + $0x8] sm:$0xff]
    %v112 = vld [vmem:[%s6] sm:$0x1]
    %v114 = vlaneseq
    %v115 = vshrl.u32 %v114, 7
    %v116 = vsub.s32 0, %v115
    %v117 = vrot.slane %v112, %v116
    %vm119 = vcmask 130048
    %v121 = vsel %vm119, %v109, 0
    %123 = vmatprep.subr.mxu0 0.0
    %124 = vmatpush1.msra.mxu0 %v110
    %125 = vmatprep.subr.mxu0 0.0
    %126 = vmatpush1.msra.mxu0 %v111
    %127 = vmatprep.subr.mxu0 0.0
    %128 = vmatpush1.msra.mxu0 0.0
    %129 = vmatprep.subr.mxu0 0.0
    %130 = vmatpush1.msra.mxu0 0.0
    %131 = vmatprep.subr.mxu0 0.0
    %132 = vmatpush1.msra.mxu0 0.0
    %133 = vmatprep.subr.mxu0 0.0
    %134 = vmatpush1.msra.mxu0 0.0
    %135 = vmatprep.subr.mxu0 0.0
    %136 = vmatpush1.msra.mxu0 0.0
    %137 = vmatprep.subr.mxu0 0.0
    %138 = vmatpush1.msra.mxu0 0.0
    %139 = vmatprep.subr.mxu0 0.0
    %140 = vmatpush1.msra.mxu0 0.0
    %141 = vmatprep.subr.mxu0 0.0
    %142 = vmatpush1.msra.mxu0 0.0
    %143 = vmatprep.subr.mxu0 0.0
    %144 = vmatpush1.msra.mxu0 0.0
    %145 = vmatprep.subr.mxu0 0.0
    %146 = vmatpush1.msra.mxu0 0.0
    %147 = vmatprep.subr.mxu0 0.0
    %148 = vmatpush1.msra.mxu0 0.0
    %149 = vmatprep.subr.mxu0 0.0
    %150 = vmatpush1.msra.mxu0 0.0
    %151 = vmatprep.subr.mxu0 0.0
    %152 = vmatpush1.msra.mxu0 0.0
    %153 = vmatprep.subr.mxu0 0.0
    %154 = vmatpush1.msra.mxu0 0.0
    %155 = vmatprep.subr.mxu0 0.0
    %156 = vmatpush1.msra.mxu0 0.0
    %157 = vmatprep.subr.mxu0 0.0
    %158 = vmatpush1.msra.mxu0 0.0
    %159 = vmatprep.subr.mxu0 0.0
    %160 = vmatpush1.msra.mxu0 0.0
    %161 = vmatprep.subr.mxu0 0.0
    %162 = vmatpush1.msra.mxu0 0.0
    %163 = vmatprep.subr.mxu0 0.0
    %164 = vmatpush1.msra.mxu0 0.0
    %165 = vmatprep.subr.mxu0 0.0
    %166 = vmatpush1.msra.mxu0 0.0
    %167 = vmatprep.subr.mxu0 0.0
    %168 = vmatpush1.msra.mxu0 0.0
    %169 = vmatprep.subr.mxu0 0.0
    %170 = vmatpush1.msra.mxu0 0.0
    %171 = vmatprep.subr.mxu0 0.0
    %172 = vmatpush1.msra.mxu0 0.0
    %173 = vmatprep.subr.mxu0 0.0
    %174 = vmatpush1.msra.mxu0 0.0
    %175 = vmatprep.subr.mxu0 0.0
    %176 = vmatpush1.msra.mxu0 0.0
    %177 = vmatprep.subr.mxu0 0.0
    %178 = vmatpush1.msra.mxu0 0.0
    %179 = vmatprep.subr.mxu0 0.0
    %180 = vmatpush1.msra.mxu0 0.0
    %181 = vmatprep.subr.mxu0 0.0
    %182 = vmatpush1.msra.mxu0 0.0
    %183 = vmatprep.subr.mxu0 0.0
    %184 = vmatpush1.msra.mxu0 0.0
    %185 = vmatprep.subr.mxu0 0.0
    %186 = vmatpush1.msra.mxu0 0.0
    %187 = vmatprep.mubr.f32.mxu0 0.0
    %188 = vmatmul.mubr.f32.gmra.mrb[0].mxu0 %v121
    %v189 = vpop.f32.mrb[0].mxu0
    %v190 = vadd.f32 %v117, %v189
    %v191 = vpop.f32.mrb[0].mxu0
    %192 = vdwg.mxu0
    %vm193 = vcmask 261120
    %194 = vst.msk [vmem:[#allocation13] sm:$0xff] %vm193, %v190
    %v195 = vld [vmem:[#allocation5] sm:$0xff]
    %v196 = vld [vmem:[#allocation10] sm:$0xff]
    %v197 = vld [vmem:[#allocation10 + $0x8] sm:$0xff]
    %v198 = vld [vmem:[#allocation10 + $0x10] sm:$0xff]
    %v199 = vld [vmem:[%s7] sm:$0x1]
    %v201 = vlaneseq
    %v202 = vshrl.u32 %v201, 7
    %v203 = vsub.s32 0, %v202
    %v204 = vrot.slane %v199, %v203
    %vm206 = vcmask 195584
    %v208 = vsel %vm206, %v195, 0
    %210 = vmatprep.subr.mxu0 0.0
    %211 = vmatpush1.msra.mxu0 %v196
    %212 = vmatprep.subr.mxu0 0.0
    %213 = vmatpush1.msra.mxu0 %v197
    %214 = vmatprep.subr.mxu0 0.0
    %215 = vmatpush1.msra.mxu0 %v198
    %216 = vmatprep.subr.mxu0 0.0
    %217 = vmatpush1.msra.mxu0 0.0
    %218 = vmatprep.subr.mxu0 0.0
    %219 = vmatpush1.msra.mxu0 0.0
    %220 = vmatprep.subr.mxu0 0.0
    %221 = vmatpush1.msra.mxu0 0.0
    %222 = vmatprep.subr.mxu0 0.0
    %223 = vmatpush1.msra.mxu0 0.0
    %224 = vmatprep.subr.mxu0 0.0
    %225 = vmatpush1.msra.mxu0 0.0
    %226 = vmatprep.subr.mxu0 0.0
    %227 = vmatpush1.msra.mxu0 0.0
    %228 = vmatprep.subr.mxu0 0.0
    %229 = vmatpush1.msra.mxu0 0.0
    %230 = vmatprep.subr.mxu0 0.0
    %231 = vmatpush1.msra.mxu0 0.0
    %232 = vmatprep.subr.mxu0 0.0
    %233 = vmatpush1.msra.mxu0 0.0
    %234 = vmatprep.subr.mxu0 0.0
    %235 = vmatpush1.msra.mxu0 0.0
    %236 = vmatprep.subr.mxu0 0.0
    %237 = vmatpush1.msra.mxu0 0.0
    %238 = vmatprep.subr.mxu0 0.0
    %239 = vmatpush1.msra.mxu0 0.0
    %240 = vmatprep.subr.mxu0 0.0
    %241 = vmatpush1.msra.mxu0 0.0
    %242 = vmatprep.subr.mxu0 0.0
    %243 = vmatpush1.msra.mxu0 0.0
    %244 = vmatprep.subr.mxu0 0.0
    %245 = vmatpush1.msra.mxu0 0.0
    %246 = vmatprep.subr.mxu0 0.0
    %247 = vmatpush1.msra.mxu0 0.0
    %248 = vmatprep.subr.mxu0 0.0
    %249 = vmatpush1.msra.mxu0 0.0
    %250 = vmatprep.subr.mxu0 0.0
    %251 = vmatpush1.msra.mxu0 0.0
    %252 = vmatprep.subr.mxu0 0.0
    %253 = vmatpush1.msra.mxu0 0.0
    %254 = vmatprep.subr.mxu0 0.0
    %255 = vmatpush1.msra.mxu0 0.0
    %256 = vmatprep.subr.mxu0 0.0
    %257 = vmatpush1.msra.mxu0 0.0
    %258 = vmatprep.subr.mxu0 0.0
    %259 = vmatpush1.msra.mxu0 0.0
    %260 = vmatprep.subr.mxu0 0.0
    %261 = vmatpush1.msra.mxu0 0.0
    %262 = vmatprep.subr.mxu0 0.0
    %263 = vmatpush1.msra.mxu0 0.0
    %264 = vmatprep.subr.mxu0 0.0
    %265 = vmatpush1.msra.mxu0 0.0
    %266 = vmatprep.subr.mxu0 0.0
    %267 = vmatpush1.msra.mxu0 0.0
    %268 = vmatprep.subr.mxu0 0.0
    %269 = vmatpush1.msra.mxu0 0.0
    %270 = vmatprep.subr.mxu0 0.0
    %271 = vmatpush1.msra.mxu0 0.0
    %272 = vmatprep.subr.mxu0 0.0
    %273 = vmatpush1.msra.mxu0 0.0
    %274 = vmatprep.mubr.f32.mxu0 0.0
    %275 = vmatmul.mubr.f32.gmra.mrb[0].mxu0 %v208
    %v276 = vpop.f32.mrb[0].mxu0
    %v277 = vadd.f32 %v204, %v276
    %v278 = vpop.f32.mrb[0].mxu0
    %279 = vdwg.mxu0
    %281 = vrot.lane.b32.xlu0 %v277, 32
    %v282 = vpop.permute.xlu0 %281
    %vm284 = vcmask 523520
    %285 = vst.msk [vmem:[#allocation13] sm:$0xff] %vm284, %v282
    %v286 = vld [vmem:[#allocation7] sm:$0xff]
    %v287 = vld [vmem:[#allocation11] sm:$0xff]
    %v288 = vld [vmem:[#allocation11 + $0x8] sm:$0xff]
    %v289 = vld [vmem:[#allocation11 + $0x10] sm:$0xff]
    %v290 = vld [vmem:[#allocation11 + $0x18] sm:$0xff]
    %v291 = vld [vmem:[%s8] sm:$0x1]
    %v293 = vlaneseq
    %v294 = vshrl.u32 %v293, 7
    %v295 = vsub.s32 0, %v294
    %v296 = vrot.slane %v291, %v295
    %v299 = vsel %vm193, %v286, 0
    %301 = vmatprep.subr.mxu0 0.0
    %302 = vmatpush1.msra.mxu0 %v287
    %303 = vmatprep.subr.mxu0 0.0
    %304 = vmatpush1.msra.mxu0 %v288
    %305 = vmatprep.subr.mxu0 0.0
    %306 = vmatpush1.msra.mxu0 %v289
    %307 = vmatprep.subr.mxu0 0.0
    %308 = vmatpush1.msra.mxu0 %v290
    %309 = vmatprep.subr.mxu0 0.0
    %310 = vmatpush1.msra.mxu0 0.0
    %311 = vmatprep.subr.mxu0 0.0
    %312 = vmatpush1.msra.mxu0 0.0
    %313 = vmatprep.subr.mxu0 0.0
    %314 = vmatpush1.msra.mxu0 0.0
    %315 = vmatprep.subr.mxu0 0.0
    %316 = vmatpush1.msra.mxu0 0.0
    %317 = vmatprep.subr.mxu0 0.0
    %318 = vmatpush1.msra.mxu0 0.0
    %319 = vmatprep.subr.mxu0 0.0
    %320 = vmatpush1.msra.mxu0 0.0
    %321 = vmatprep.subr.mxu0 0.0
    %322 = vmatpush1.msra.mxu0 0.0
    %323 = vmatprep.subr.mxu0 0.0
    %324 = vmatpush1.msra.mxu0 0.0
    %325 = vmatprep.subr.mxu0 0.0
    %326 = vmatpush1.msra.mxu0 0.0
    %327 = vmatprep.subr.mxu0 0.0
    %328 = vmatpush1.msra.mxu0 0.0
    %329 = vmatprep.subr.mxu0 0.0
    %330 = vmatpush1.msra.mxu0 0.0
    %331 = vmatprep.subr.mxu0 0.0
    %332 = vmatpush1.msra.mxu0 0.0
    %333 = vmatprep.subr.mxu0 0.0
    %334 = vmatpush1.msra.mxu0 0.0
    %335 = vmatprep.subr.mxu0 0.0
    %336 = vmatpush1.msra.mxu0 0.0
    %337 = vmatprep.subr.mxu0 0.0
    %338 = vmatpush1.msra.mxu0 0.0
    %339 = vmatprep.subr.mxu0 0.0
    %340 = vmatpush1.msra.mxu0 0.0
    %341 = vmatprep.subr.mxu0 0.0
    %342 = vmatpush1.msra.mxu0 0.0
    %343 = vmatprep.subr.mxu0 0.0
    %344 = vmatpush1.msra.mxu0 0.0
    %345 = vmatprep.subr.mxu0 0.0
    %346 = vmatpush1.msra.mxu0 0.0
    %347 = vmatprep.subr.mxu0 0.0
    %348 = vmatpush1.msra.mxu0 0.0
    %349 = vmatprep.subr.mxu0 0.0
    %350 = vmatpush1.msra.mxu0 0.0
    %351 = vmatprep.subr.mxu0 0.0
    %352 = vmatpush1.msra.mxu0 0.0
    %353 = vmatprep.subr.mxu0 0.0
    %354 = vmatpush1.msra.mxu0 0.0
    %355 = vmatprep.subr.mxu0 0.0
    %356 = vmatpush1.msra.mxu0 0.0
    %357 = vmatprep.subr.mxu0 0.0
    %358 = vmatpush1.msra.mxu0 0.0
    %359 = vmatprep.subr.mxu0 0.0
    %360 = vmatpush1.msra.mxu0 0.0
    %361 = vmatprep.subr.mxu0 0.0
    %362 = vmatpush1.msra.mxu0 0.0
    %363 = vmatprep.subr.mxu0 0.0
    %364 = vmatpush1.msra.mxu0 0.0
    %365 = vmatprep.mubr.f32.mxu0 0.0
    %366 = vmatmul.mubr.f32.gmra.mrb[0].mxu0 %v299
    %v367 = vpop.f32.mrb[0].mxu0
    %v368 = vadd.f32 %v296, %v367
    %v369 = vpop.f32.mrb[0].mxu0
    %370 = vdwg.mxu0
    %372 = vrot.lane.b32.xlu0 %v368, 64
    %v373 = vpop.permute.xlu0 %372
    %vm375 = vcmask 785920
    %376 = vst.msk [vmem:[#allocation13] sm:$0xff] %vm375, %v373
    %vm377 = vcmask 1048320
    %378 = vst.msk [vmem:[#allocation13] sm:$0xff] %vm377, 0.0
    // Predicated region
    $region62: #{tpu_custom_call.1} parent=1 // pred_check
      _
    $region63: #{tpu_custom_call.1} parent=1 // pred_check_branch
      %380 = sbr.rel (0) target = $region65
    $region64: #{tpu_custom_call.1} parent=1 // pred_region
      %s382 = ssub.s32 128, 128
      %383 = vsyncadd [#allocation4], %s382
      %s385 = sshll.u32 [#allocation13], 4
      %s386 = int_to_ptr.vmem [resolvable:$true] %s385
      %388 = dma.vmem_to_hbm [thread:$0]  %s386, 128, %s9, [#allocation4]
    $region65: #{tpu_custom_call.1} parent=1 // pred_fallthru
      _
    // Predicated region
    $region66: #{tpu_custom_call.1} parent=1 // pred_check
      _
    $region67: #{tpu_custom_call.1} parent=1 // pred_check_branch
      %390 = sbr.rel (0) target = $region69
    $region68: #{tpu_custom_call.1} parent=1 // pred_region
      %391 = dma.done [#allocation4], 128
    $region69: #{tpu_custom_call.1} parent=1 // pred_fallthru
      _
    %392 = vsyncpa [#allocation3], 1
    %393 = vsyncpa [#allocation6], 1
    %394 = vsyncpa [#allocation9], 1
    %395 = vsyncpa [#allocation12], 1
    %396 = vsyncpa [#allocation4], 1

</llo_original>
